<compile_context>
chip_gen: v5e
topology: v5e:2x2
jax: 0.10.0
libtpu: 0.0.40
codegen_flags: <defaults>
</compile_context>

<pallas_src>
import functools

import jax
import jax.numpy as jnp
from jax.experimental import pallas as pl
from jax.experimental.pallas import tpu as pltpu


def _d2rl_q_fused_kernel(state_ref, action_ref, ws_ref, wa_ref, wx_ref,
                         b_ref, wo_ref, bo_ref, q_ref, *,
                         hidden_dim, num_layers):
    H2 = 2 * hidden_dim
    cdt = ws_ref.dtype          # MXU input dtype (bf16 in the fast path, f32 for checks)

    # One-shot xu projection for ALL layers: two *independent* matmuls
    # (state rows + action rows of the packed xu weights).  They carry no data
    # dependence on the layer chain, so they pipeline under it.
    xu_proj = (jnp.dot(state_ref[...].astype(cdt), ws_ref[...],
                       preferred_element_type=jnp.float32)
               + jnp.dot(action_ref[...].astype(cdt), wa_ref[...],
                         preferred_element_type=jnp.float32))       # (B, L*2H) f32

    # Layer 1 degenerates to a bias-add + ReLU (its only input is xu).
    h = jnp.maximum(xu_proj[:, 0:H2] + b_ref[0], 0.0)               # (B, 2H) f32

    # Layers 2..L: one block-diagonal (2H, 2H) matmul each; h never leaves vregs.
    for l in range(1, num_layers):      # static unroll
        y = jnp.dot(h.astype(cdt), wx_ref[l - 1],
                    preferred_element_type=jnp.float32)
        h = jnp.maximum(y + xu_proj[:, l * H2:(l + 1) * H2] + b_ref[l], 0.0)

    # Fused heads: one (B, 2H) x (2H, 2) matmul, single (B, 2) output store.
    q_ref[...] = (jnp.dot(h.astype(cdt), wo_ref[...],
                          preferred_element_type=jnp.float32) + bo_ref[...])


def pack_params(params, num_inputs, num_actions, hidden_dim, num_layers,
                dtype=jnp.bfloat16):
    """Pack per-stream PyTorch-style weights into the fused kernel layout."""
    H = hidden_dim
    H2 = 2 * H
    xu_dim = num_inputs + num_actions

    # xu rows of every layer, side by side over the L*2H output lanes:
    # layer l -> lanes [l*2H : l*2H+H] (stream 1), [l*2H+H : (l+1)*2H] (stream 2).
    w_xu = jnp.zeros((xu_dim, num_layers * H2), jnp.float32)
    wx_layers, b_layers = [], []

    w1, b1 = params["l1_1"]            # (xu_dim, H), (1, H)
    w2, b2 = params["l2_1"]
    w_xu = w_xu.at[:, 0:H].set(w1).at[:, H:H2].set(w2)
    b_layers.append(jnp.concatenate([b1, b2], axis=1))

    for l in range(2, num_layers + 1):
        w1, b1 = params[f"l1_{l}"]     # (H + xu_dim, H): rows [:H] hidden, [H:] xu
        w2, b2 = params[f"l2_{l}"]
        off = (l - 1) * H2
        w_xu = (w_xu.at[:, off:off + H].set(w1[H:])
                    .at[:, off + H:off + H2].set(w2[H:]))
        # Block-diagonal hidden weights: x1 lanes -> stream-1 out, x2 -> stream-2.
        wx = jnp.zeros((H2, H2), jnp.float32)
        wx = wx.at[:H, :H].set(w1[:H]).at[H:, H:].set(w2[:H])
        wx_layers.append(wx)
        b_layers.append(jnp.concatenate([b1, b2], axis=1))

    w_state = w_xu[:num_inputs].astype(dtype)           # (num_inputs,  L*2H)
    w_action = w_xu[num_inputs:].astype(dtype)          # (num_actions, L*2H)
    wx_stack = jnp.stack(wx_layers).astype(dtype)       # (L-1, 2H, 2H)
    b_stack = jnp.stack(b_layers).astype(jnp.float32)   # (L, 1, 2H)  (f32 epilogue)

    # Fused heads: column 0 = out1 on x1 lanes, column 1 = out2 on x2 lanes.
    wo1, bo1 = params["out1"]
    wo2, bo2 = params["out2"]
    w_out = jnp.zeros((H2, 2), jnp.float32)
    w_out = w_out.at[:H, 0:1].set(wo1).at[H:, 1:2].set(wo2)
    b_out = jnp.concatenate([bo1, bo2], axis=1)

    return (w_state, w_action, wx_stack, b_stack,
            w_out.astype(dtype), b_out.astype(jnp.float32))


def d2rl_q_forward(state, action, packed, hidden_dim, num_layers):
    w_state, w_action, wx, b, wo, bo = packed
    state_sq = jnp.squeeze(state, axis=1)      # (B, num_inputs); pure reshape
    B = state_sq.shape[0]

    kernel = functools.partial(_d2rl_q_fused_kernel,
                               hidden_dim=hidden_dim, num_layers=num_layers)
    vmem = lambda: pl.BlockSpec(memory_space=pltpu.MemorySpace.VMEM)

    q = pl.pallas_call(
        kernel,
        out_shape=jax.ShapeDtypeStruct((B, 2), jnp.float32),
        in_specs=[vmem() for _ in range(8)],
        out_specs=vmem(),
    )(state_sq, action, w_state, w_action, wx, b, wo, bo)
    return q[:, 0:1], q[:, 1:2]


def _xavier_linear(key, fan_in, fan_out):
    # torch.nn.init.xavier_uniform_ with gain=1, bias = 0.
    bound = (6.0 / (fan_in + fan_out)) ** 0.5
    w = jax.random.uniform(key, (fan_in, fan_out), jnp.float32, -bound, bound)
    b = jnp.zeros((1, fan_out), jnp.float32)
    return w, b


def init_params(key, num_inputs, num_actions, hidden_dim, num_layers=4):
    xu_dim = num_inputs + num_actions
    in_dim = xu_dim + hidden_dim
    names_dims = []
    for stream in (1, 2):
        names_dims.append((f"l{stream}_1", xu_dim, hidden_dim))
        for l in range(2, num_layers + 1):
            names_dims.append((f"l{stream}_{l}", in_dim, hidden_dim))
    names_dims += [("out1", hidden_dim, 1), ("out2", hidden_dim, 1)]
    keys = jax.random.split(key, len(names_dims))
    return {name: _xavier_linear(k, fi, fo)
            for k, (name, fi, fo) in zip(keys, names_dims)}


def reference_forward(state, action, params, num_layers=4):
    # Pure-JAX reference mirroring the PyTorch forward (per-stream, with concats).
    xu = jnp.concatenate([jnp.squeeze(state, axis=1), action], axis=1)

    def lin(name, x):
        w, b = params[name]
        return x @ w + b

    x1 = jax.nn.relu(lin("l1_1", xu))
    x2 = jax.nn.relu(lin("l2_1", xu))
    for l in range(2, num_layers + 1):
        x1 = jax.nn.relu(lin(f"l1_{l}", jnp.concatenate([x1, xu], axis=1)))
        x2 = jax.nn.relu(lin(f"l2_{l}", jnp.concatenate([x2, xu], axis=1)))
    return lin("out1", x1), lin("out2", x2)


if __name__ == "__main__":
    num_inputs, num_actions, hidden_dim, num_layers = 16, 4, 32, 4
    batch = 8

    key = jax.random.PRNGKey(0)
    k_state, k_action, k_params = jax.random.split(key, 3)

    # Matches torch usage: state has a singleton dim that forward squeezes.
    state = jax.random.normal(k_state, (batch, 1, num_inputs), jnp.float32)
    action = jax.random.normal(k_action, (batch, num_actions), jnp.float32)
    params = init_params(k_params, num_inputs, num_actions, hidden_dim, num_layers)

    r1, r2 = reference_forward(state, action, params, num_layers)

    # 1) f32-weight variant: tight check of packing + fused kernel math.
    packed_f32 = pack_params(params, num_inputs, num_actions, hidden_dim,
                             num_layers, dtype=jnp.float32)
    q1, q2 = d2rl_q_forward(state, action, packed_f32, hidden_dim, num_layers)
    q1 = jax.block_until_ready(q1)
    q2 = jax.block_until_ready(q2)
    assert q1.shape == (batch, 1) and q2.shape == (batch, 1)
    assert jnp.allclose(q1, r1, atol=1e-5, rtol=1e-5)
    assert jnp.allclose(q2, r2, atol=1e-5, rtol=1e-5)

    # 2) bf16-weight variant (native MXU input dtype): looser tolerance.
    packed_bf16 = pack_params(params, num_inputs, num_actions, hidden_dim,
                              num_layers, dtype=jnp.bfloat16)
    q1b, q2b = d2rl_q_forward(state, action, packed_bf16, hidden_dim, num_layers)
    q1b = jax.block_until_ready(q1b)
    q2b = jax.block_until_ready(q2b)
    assert jnp.allclose(q1b, r1, atol=5e-2, rtol=5e-2)
    assert jnp.allclose(q2b, r2, atol=5e-2, rtol=5e-2)

    print("KERNEL_OK")
</pallas_src>

<mosaic_0001>
module attributes {stable_mosaic.version = 11 : i64} {
  func.func @_d2rl_q_fused_kernel(%arg0: memref<8x16xf32, #tpu.memory_space<vmem>>, %arg1: memref<8x4xf32, #tpu.memory_space<vmem>>, %arg2: memref<16x256xf32, #tpu.memory_space<vmem>>, %arg3: memref<4x256xf32, #tpu.memory_space<vmem>>, %arg4: memref<3x64x64xf32, #tpu.memory_space<vmem>>, %arg5: memref<4x1x64xf32, #tpu.memory_space<vmem>>, %arg6: memref<64x2xf32, #tpu.memory_space<vmem>>, %arg7: memref<1x2xf32, #tpu.memory_space<vmem>>, %arg8: memref<8x2xf32, #tpu.memory_space<vmem>>) attributes {dimension_semantics = [], scalar_prefetch = 0 : i64, scratch_operands = 0 : i64, tpu.core_type = #tpu.core_type<tc>} {
    %c0 = arith.constant 0 : index
    %c0_0 = arith.constant 0 : index
    %0 = vector.load %arg0[%c0, %c0_0] : memref<8x16xf32, #tpu.memory_space<vmem>>, vector<8x16xf32>
    %c0_1 = arith.constant 0 : index
    %c0_2 = arith.constant 0 : index
    %1 = vector.load %arg2[%c0_1, %c0_2] : memref<16x256xf32, #tpu.memory_space<vmem>>, vector<16x256xf32>
    %cst = arith.constant dense<0.000000e+00> : vector<8x256xf32>
    %2 = tpu.matmul %0, %1, %cst {dimension_numbers = #tpu.dot_dimension_numbers<[1], [0], [0], [1], [0, 0, 1, 1], [], []>} : vector<8x16xf32>, vector<16x256xf32>, vector<8x256xf32> -> vector<8x256xf32>
    %c0_3 = arith.constant 0 : index
    %c0_4 = arith.constant 0 : index
    %3 = vector.load %arg1[%c0_3, %c0_4] : memref<8x4xf32, #tpu.memory_space<vmem>>, vector<8x4xf32>
    %c0_5 = arith.constant 0 : index
    %c0_6 = arith.constant 0 : index
    %4 = vector.load %arg3[%c0_5, %c0_6] : memref<4x256xf32, #tpu.memory_space<vmem>>, vector<4x256xf32>
    %cst_7 = arith.constant dense<0.000000e+00> : vector<8x256xf32>
    %5 = tpu.matmul %3, %4, %cst_7 {dimension_numbers = #tpu.dot_dimension_numbers<[1], [0], [0], [1], [0, 0, 1, 1], [], []>} : vector<8x4xf32>, vector<4x256xf32>, vector<8x256xf32> -> vector<8x256xf32>
    %6 = arith.addf %2, %5 : vector<8x256xf32>
    %7 = vector.extract_strided_slice %6 {offsets = [0, 0], sizes = [8, 64], strides = [1, 1]} : vector<8x256xf32> to vector<8x64xf32>
    %c0_8 = arith.constant 0 : index
    %c0_9 = arith.constant 0 : index
    %c0_10 = arith.constant 0 : index
    %8 = vector.load %arg5[%c0_8, %c0_9, %c0_10] : memref<4x1x64xf32, #tpu.memory_space<vmem>>, vector<1x1x64xf32>
    %9 = vector.shape_cast %8 : vector<1x1x64xf32> to vector<1x64xf32>
    %10 = vector.broadcast %9 : vector<1x64xf32> to vector<8x64xf32>
    %11 = arith.addf %7, %10 : vector<8x64xf32>
    %cst_11 = arith.constant 0.000000e+00 : f32
    %12 = vector.broadcast %cst_11 : f32 to vector<8x64xf32>
    %13 = arith.maximumf %11, %12 : vector<8x64xf32>
    %c0_12 = arith.constant 0 : index
    %c0_13 = arith.constant 0 : index
    %c0_14 = arith.constant 0 : index
    %14 = vector.load %arg4[%c0_12, %c0_13, %c0_14] : memref<3x64x64xf32, #tpu.memory_space<vmem>>, vector<1x64x64xf32>
    %15 = vector.shape_cast %14 : vector<1x64x64xf32> to vector<64x64xf32>
    %cst_15 = arith.constant dense<0.000000e+00> : vector<8x64xf32>
    %16 = tpu.matmul %13, %15, %cst_15 {dimension_numbers = #tpu.dot_dimension_numbers<[1], [0], [0], [1], [0, 0, 1, 1], [], []>} : vector<8x64xf32>, vector<64x64xf32>, vector<8x64xf32> -> vector<8x64xf32>
    %17 = vector.extract_strided_slice %6 {offsets = [0, 64], sizes = [8, 64], strides = [1, 1]} : vector<8x256xf32> to vector<8x64xf32>
    %18 = arith.addf %16, %17 : vector<8x64xf32>
    %c1 = arith.constant 1 : index
    %c0_16 = arith.constant 0 : index
    %c0_17 = arith.constant 0 : index
    %19 = vector.load %arg5[%c1, %c0_16, %c0_17] : memref<4x1x64xf32, #tpu.memory_space<vmem>>, vector<1x1x64xf32>
    %20 = vector.shape_cast %19 : vector<1x1x64xf32> to vector<1x64xf32>
    %21 = vector.broadcast %20 : vector<1x64xf32> to vector<8x64xf32>
    %22 = arith.addf %18, %21 : vector<8x64xf32>
    %cst_18 = arith.constant 0.000000e+00 : f32
    %23 = vector.broadcast %cst_18 : f32 to vector<8x64xf32>
    %24 = arith.maximumf %22, %23 : vector<8x64xf32>
    %c1_19 = arith.constant 1 : index
    %c0_20 = arith.constant 0 : index
    %c0_21 = arith.constant 0 : index
    %25 = vector.load %arg4[%c1_19, %c0_20, %c0_21] : memref<3x64x64xf32, #tpu.memory_space<vmem>>, vector<1x64x64xf32>
    %26 = vector.shape_cast %25 : vector<1x64x64xf32> to vector<64x64xf32>
    %cst_22 = arith.constant dense<0.000000e+00> : vector<8x64xf32>
    %27 = tpu.matmul %24, %26, %cst_22 {dimension_numbers = #tpu.dot_dimension_numbers<[1], [0], [0], [1], [0, 0, 1, 1], [], []>} : vector<8x64xf32>, vector<64x64xf32>, vector<8x64xf32> -> vector<8x64xf32>
    %28 = vector.extract_strided_slice %6 {offsets = [0, 128], sizes = [8, 64], strides = [1, 1]} : vector<8x256xf32> to vector<8x64xf32>
    %29 = arith.addf %27, %28 : vector<8x64xf32>
    %c2 = arith.constant 2 : index
    %c0_23 = arith.constant 0 : index
    %c0_24 = arith.constant 0 : index
    %30 = vector.load %arg5[%c2, %c0_23, %c0_24] : memref<4x1x64xf32, #tpu.memory_space<vmem>>, vector<1x1x64xf32>
    %31 = vector.shape_cast %30 : vector<1x1x64xf32> to vector<1x64xf32>
    %32 = vector.broadcast %31 : vector<1x64xf32> to vector<8x64xf32>
    %33 = arith.addf %29, %32 : vector<8x64xf32>
    %cst_25 = arith.constant 0.000000e+00 : f32
    %34 = vector.broadcast %cst_25 : f32 to vector<8x64xf32>
    %35 = arith.maximumf %33, %34 : vector<8x64xf32>
    %c2_26 = arith.constant 2 : index
    %c0_27 = arith.constant 0 : index
    %c0_28 = arith.constant 0 : index
    %36 = vector.load %arg4[%c2_26, %c0_27, %c0_28] : memref<3x64x64xf32, #tpu.memory_space<vmem>>, vector<1x64x64xf32>
    %37 = vector.shape_cast %36 : vector<1x64x64xf32> to vector<64x64xf32>
    %cst_29 = arith.constant dense<0.000000e+00> : vector<8x64xf32>
    %38 = tpu.matmul %35, %37, %cst_29 {dimension_numbers = #tpu.dot_dimension_numbers<[1], [0], [0], [1], [0, 0, 1, 1], [], []>} : vector<8x64xf32>, vector<64x64xf32>, vector<8x64xf32> -> vector<8x64xf32>
    %39 = vector.extract_strided_slice %6 {offsets = [0, 192], sizes = [8, 64], strides = [1, 1]} : vector<8x256xf32> to vector<8x64xf32>
    %40 = arith.addf %38, %39 : vector<8x64xf32>
    %c3 = arith.constant 3 : index
    %c0_30 = arith.constant 0 : index
    %c0_31 = arith.constant 0 : index
    %41 = vector.load %arg5[%c3, %c0_30, %c0_31] : memref<4x1x64xf32, #tpu.memory_space<vmem>>, vector<1x1x64xf32>
    %42 = vector.shape_cast %41 : vector<1x1x64xf32> to vector<1x64xf32>
    %43 = vector.broadcast %42 : vector<1x64xf32> to vector<8x64xf32>
    %44 = arith.addf %40, %43 : vector<8x64xf32>
    %cst_32 = arith.constant 0.000000e+00 : f32
    %45 = vector.broadcast %cst_32 : f32 to vector<8x64xf32>
    %46 = arith.maximumf %44, %45 : vector<8x64xf32>
    %c0_33 = arith.constant 0 : index
    %c0_34 = arith.constant 0 : index
    %47 = vector.load %arg6[%c0_33, %c0_34] : memref<64x2xf32, #tpu.memory_space<vmem>>, vector<64x2xf32>
    %cst_35 = arith.constant dense<0.000000e+00> : vector<8x2xf32>
    %48 = tpu.matmul %46, %47, %cst_35 {dimension_numbers = #tpu.dot_dimension_numbers<[1], [0], [0], [1], [0, 0, 1, 1], [], []>} : vector<8x64xf32>, vector<64x2xf32>, vector<8x2xf32> -> vector<8x2xf32>
    %c0_36 = arith.constant 0 : index
    %c0_37 = arith.constant 0 : index
    %49 = vector.load %arg7[%c0_36, %c0_37] : memref<1x2xf32, #tpu.memory_space<vmem>>, vector<1x2xf32>
    %50 = vector.broadcast %49 : vector<1x2xf32> to vector<8x2xf32>
    %51 = arith.addf %48, %50 : vector<8x2xf32>
    %c0_38 = arith.constant 0 : index
    %c0_39 = arith.constant 0 : index
    %52 = vector.load %arg8[%c0_38, %c0_39] : memref<8x2xf32, #tpu.memory_space<vmem>>, vector<8x2xf32>
    tpu.vector_store %arg8[%c0_38, %c0_39], %51 {strides = array<i32>} : memref<8x2xf32, #tpu.memory_space<vmem>>, vector<8x2xf32>,
    return
  }
}

</mosaic_0001>

<llo_original>
// kernel: tpu_custom_call.1
$region0: #{tpu_custom_call.1}
  #allocation0 [shape = 'u32[]', space=smem, size = 0x4, offset = 0x4, fixed_abs, tag = 'smem constant byte address 0x4 - core index']
  #allocation1 [shape = 'u32[72,128]{1,0:T(1,128)}', space=vmem, size = 0x9000, scoped, tag = 'internal scratch']
  %s0 = inlined_call_operand.vmem [shape: f32[8,16], index: 0, kind: input, shape index: {}]
  %s1 = inlined_call_operand.vmem [shape: f32[8,4], index: 1, kind: input, shape index: {}]
  %s2 = inlined_call_operand.vmem [shape: f32[16,256], index: 2, kind: input, shape index: {}]
  %s3 = inlined_call_operand.vmem [shape: f32[4,256], index: 3, kind: input, shape index: {}]
  %s4 = inlined_call_operand.hbm [shape: f32[3,64,64], index: 4, kind: input, shape index: {}]
  %s5 = inlined_call_operand.vmem [shape: f32[4,1,64], index: 5, kind: input, shape index: {}]
  %s6 = inlined_call_operand.vmem [shape: f32[64,2], index: 6, kind: input, shape index: {}]
  %s7 = inlined_call_operand.vmem [shape: f32[1,2], index: 7, kind: input, shape index: {}]
  %s8 = inlined_call_operand.vmem [shape: f32[8,2], index: 8, kind: output, shape index: {}]
  %s9 = sld [smem:[#allocation0]]
  $region46: #{tpu_custom_call.1} parent=0
    _
  %s11 = ssub.s32 1, %s9
  %s12 = scalar_select 0, %s11, %s9
  $region1: #{tpu_custom_call.1} parent=0
    #allocation2 [shape = 'u8[98304]{0}', space=vmem, size = 0x18000, scoped, tag = 'input window, operand 4, single buffered']
    #allocation3 [shape = 's32[1]{0}', space=sflag, size = 0x4, scoped, tag = 'scoped memory for tpu_custom_call.1']
    %13 = vsyncpa [#allocation3], 0
    // Predicated region
    $region2: #{tpu_custom_call.1} parent=1 // pred_check
      _
    $region3: #{tpu_custom_call.1} parent=1 // pred_check_branch
      %15 = sbr.rel (0) target = $region5
    $region4: #{tpu_custom_call.1} parent=1 // pred_region
      _
    $region5: #{tpu_custom_call.1} parent=1 // pred_fallthru
      _
    // Predicated region
    $region6: #{tpu_custom_call.1} parent=1 // pred_check
      _
    $region7: #{tpu_custom_call.1} parent=1 // pred_check_branch
      %17 = sbr.rel (0) target = $region9
    $region8: #{tpu_custom_call.1} parent=1 // pred_region
      _
    $region9: #{tpu_custom_call.1} parent=1 // pred_fallthru
      _
    // Predicated region
    $region10: #{tpu_custom_call.1} parent=1 // pred_check
      _
    $region11: #{tpu_custom_call.1} parent=1 // pred_check_branch
      %19 = sbr.rel (0) target = $region13
    $region12: #{tpu_custom_call.1} parent=1 // pred_region
      _
    $region13: #{tpu_custom_call.1} parent=1 // pred_fallthru
      _
    // Predicated region
    $region14: #{tpu_custom_call.1} parent=1 // pred_check
      _
    $region15: #{tpu_custom_call.1} parent=1 // pred_check_branch
      %21 = sbr.rel (0) target = $region17
    $region16: #{tpu_custom_call.1} parent=1 // pred_region
      _
    $region17: #{tpu_custom_call.1} parent=1 // pred_fallthru
      _
    // Predicated region
    $region18: #{tpu_custom_call.1} parent=1 // pred_check
      _
    $region19: #{tpu_custom_call.1} parent=1 // pred_check_branch
      %23 = sbr.rel (0) target = $region21
    $region20: #{tpu_custom_call.1} parent=1 // pred_region
      %25 = vsyncadd [#allocation3], 0
      %s26 = sshll.u32 %s4, 4
      %s27 = int_to_ptr.hbm [resolvable:$true] %s26
      %s28 = sshll.u32 [#allocation2], 4
      %s29 = int_to_ptr.vmem [resolvable:$true] %s28
      %34 = dma.hbm_to_vmem [thread:$0]  %s27, 3072, %s29, [#allocation3], 128, 128, 8
    $region21: #{tpu_custom_call.1} parent=1 // pred_fallthru
      _
    // Predicated region
    $region22: #{tpu_custom_call.1} parent=1 // pred_check
      _
    $region23: #{tpu_custom_call.1} parent=1 // pred_check_branch
      %36 = sbr.rel (0) target = $region25
    $region24: #{tpu_custom_call.1} parent=1 // pred_region
      _
    $region25: #{tpu_custom_call.1} parent=1 // pred_fallthru
      _
    // Predicated region
    $region26: #{tpu_custom_call.1} parent=1 // pred_check
      _
    $region27: #{tpu_custom_call.1} parent=1 // pred_check_branch
      %38 = sbr.rel (0) target = $region29
    $region28: #{tpu_custom_call.1} parent=1 // pred_region
      _
    $region29: #{tpu_custom_call.1} parent=1 // pred_fallthru
      _
    // Predicated region
    $region30: #{tpu_custom_call.1} parent=1 // pred_check
      _
    $region31: #{tpu_custom_call.1} parent=1 // pred_check_branch
      %40 = sbr.rel (0) target = $region33
    $region32: #{tpu_custom_call.1} parent=1 // pred_region
      _
    $region33: #{tpu_custom_call.1} parent=1 // pred_fallthru
      _
    // Predicated region
    $region34: #{tpu_custom_call.1} parent=1 // pred_check
      _
    $region35: #{tpu_custom_call.1} parent=1 // pred_check_branch
      %42 = sbr.rel (0) target = $region37
    $region36: #{tpu_custom_call.1} parent=1 // pred_region
      %44 = dma.done [#allocation3], 3072
    $region37: #{tpu_custom_call.1} parent=1 // pred_fallthru
      _
    %v45 = vld [vmem:[%s0] sm:$0xff]
    %v46 = vld [vmem:[%s2] sm:$0xff]
    %v47 = vld [vmem:[%s2 + $0x8] sm:$0xff]
    %v48 = vld [vmem:[%s2 + $0x10] sm:$0xff]
    %v49 = vld [vmem:[%s2 + $0x18] sm:$0xff]
    %v50 = vld [vmem:[%s1] sm:$0xff]
    %v51 = vld [vmem:[%s3] sm:$0xff]
    %53 = vst [vmem:[#allocation1] ss:$2 sm:$0xff] %v51
    %v54 = vld.sshfl [vmem:[#allocation1] sm:$0xff pattern:$0x75316420]
    %v55 = vld.sshfl [vmem:[#allocation1 + $0x8] sm:$0xff pattern:$0x75316420]
    %vm56 = vcmask 31744
    %v58 = vsel %vm56, %v50, 0
    %vm60 = vcmask 1043456
    %v61 = vsel %vm60, %v54, 0
    %v63 = vsel %vm60, %v55, 0
    %65 = vmatpush.msra.mxu0 0.0
    %66 = vmatpush.msra.mxu0 0.0
    %67 = vmatpush.msra.mxu0 0.0
    %68 = vmatpush.msra.mxu0 0.0
    %69 = vmatpush.msra.mxu0 0.0
    %70 = vmatpush.msra.mxu0 0.0
    %71 = vmatpush.msra.mxu0 0.0
    %72 = vmatpush.msra.mxu0 0.0
    %73 = vmatpush.msra.mxu0 0.0
    %74 = vmatpush.msra.mxu0 0.0
    %75 = vmatpush.msra.mxu0 0.0
    %76 = vmatpush.msra.mxu0 0.0
    %77 = vmatpush.msra.mxu0 0.0
    %78 = vmatpush.msra.mxu0 0.0
    %79 = vmatpush.msra.mxu0 0.0
    %80 = vmatpush.msra.mxu0 %v61
    %81 = vmatmul.f32.gmra.mxu0 %v58
    %v82 = vpop.f32.mrf.mxu0
    %v83 = vadd.f32 0.0, %v82
    %84 = vdwg.mxu0
    %85 = vmatpush.msra.mxu0 0.0
    %86 = vmatpush.msra.mxu0 0.0
    %87 = vmatpush.msra.mxu0 0.0
    %88 = vmatpush.msra.mxu0 0.0
    %89 = vmatpush.msra.mxu0 0.0
    %90 = vmatpush.msra.mxu0 0.0
    %91 = vmatpush.msra.mxu0 0.0
    %92 = vmatpush.msra.mxu0 0.0
    %93 = vmatpush.msra.mxu0 0.0
    %94 = vmatpush.msra.mxu0 0.0
    %95 = vmatpush.msra.mxu0 0.0
    %96 = vmatpush.msra.mxu0 0.0
    %97 = vmatpush.msra.mxu0 0.0
    %98 = vmatpush.msra.mxu0 0.0
    %99 = vmatpush.msra.mxu0 0.0
    %100 = vmatpush.msra.mxu0 %v63
    %101 = vmatmul.f32.gmra.mxu0 %v58
    %v102 = vpop.f32.mrf.mxu0
    %v103 = vadd.f32 0.0, %v102
    %104 = vdwg.mxu0
    %vm105 = vcmask 130048
    %v107 = vsel %vm105, %v45, 0
    %109 = vmatpush.msra.mxu0 0.0
    %110 = vmatpush.msra.mxu0 0.0
    %111 = vmatpush.msra.mxu0 0.0
    %112 = vmatpush.msra.mxu0 0.0
    %113 = vmatpush.msra.mxu0 0.0
    %114 = vmatpush.msra.mxu0 0.0
    %115 = vmatpush.msra.mxu0 0.0
    %116 = vmatpush.msra.mxu0 0.0
    %117 = vmatpush.msra.mxu0 0.0
    %118 = vmatpush.msra.mxu0 0.0
    %119 = vmatpush.msra.mxu0 0.0
    %120 = vmatpush.msra.mxu0 0.0
    %121 = vmatpush.msra.mxu0 0.0
    %122 = vmatpush.msra.mxu0 0.0
    %123 = vmatpush.msra.mxu0 %v48
    %124 = vmatpush.msra.mxu0 %v46
    %125 = vmatmul.f32.gmra.mxu0 %v107
    %v126 = vpop.f32.mrf.mxu0
    %v127 = vadd.f32 %v83, %v126
    %128 = vdwg.mxu0
    %129 = vmatpush.msra.mxu0 0.0
    %130 = vmatpush.msra.mxu0 0.0
    %131 = vmatpush.msra.mxu0 0.0
    %132 = vmatpush.msra.mxu0 0.0
    %133 = vmatpush.msra.mxu0 0.0
    %134 = vmatpush.msra.mxu0 0.0
    %135 = vmatpush.msra.mxu0 0.0
    %136 = vmatpush.msra.mxu0 0.0
    %137 = vmatpush.msra.mxu0 0.0
    %138 = vmatpush.msra.mxu0 0.0
    %139 = vmatpush.msra.mxu0 0.0
    %140 = vmatpush.msra.mxu0 0.0
    %141 = vmatpush.msra.mxu0 0.0
    %142 = vmatpush.msra.mxu0 0.0
    %143 = vmatpush.msra.mxu0 %v49
    %144 = vmatpush.msra.mxu0 %v47
    %145 = vmatmul.f32.gmra.mxu0 %v107
    %v146 = vpop.f32.mrf.mxu0
    %v147 = vadd.f32 %v103, %v146
    %148 = vdwg.mxu0
    %v149 = vld [vmem:[%s5] sm:$0x1]
    %v151 = vperm.slane %v149, 0
    %v153 = vadd.f32 %v127, %v151
    %v154 = vmax.f32 %v153, 0.0
    %v155 = vld [vmem:[#allocation2] sm:$0xff]
    %v156 = vld [vmem:[#allocation2 + $0x8] sm:$0xff]
    %v157 = vld [vmem:[#allocation2 + $0x10] sm:$0xff]
    %v158 = vld [vmem:[#allocation2 + $0x18] sm:$0xff]
    %v159 = vld [vmem:[#allocation2 + $0x20] sm:$0xff]
    %v160 = vld [vmem:[#allocation2 + $0x28] sm:$0xff]
    %v161 = vld [vmem:[#allocation2 + $0x30] sm:$0xff]
    %v162 = vld [vmem:[#allocation2 + $0x38] sm:$0xff]
    %164 = vrot.lane.b32.xlu0 %v127, 64
    %v165 = vpop.permute.xlu0 %164
    %vm167 = vcmask 523264
    %v169 = vsel %vm167, %v154, 0
    %171 = vmatpush.msra.mxu0 0.0
    %172 = vmatpush.msra.mxu0 0.0
    %173 = vmatpush.msra.mxu0 0.0
    %174 = vmatpush.msra.mxu0 0.0
    %175 = vmatpush.msra.mxu0 0.0
    %176 = vmatpush.msra.mxu0 0.0
    %177 = vmatpush.msra.mxu0 0.0
    %178 = vmatpush.msra.mxu0 0.0
    %179 = vmatpush.msra.mxu0 %v162
    %180 = vmatpush.msra.mxu0 %v161
    %181 = vmatpush.msra.mxu0 %v160
    %182 = vmatpush.msra.mxu0 %v159
    %183 = vmatpush.msra.mxu0 %v158
    %184 = vmatpush.msra.mxu0 %v157
    %185 = vmatpush.msra.mxu0 %v156
    %186 = vmatpush.msra.mxu0 %v155
    %187 = vmatmul.f32.gmra.mxu0 %v169
    %v188 = vpop.f32.mrf.mxu0
    %v189 = vadd.f32 %v165, %v188
    %190 = vdwg.mxu0
    %s191 = scalar_lea.vmem %s5, 1
    %v192 = vld [vmem:[%s191] sm:$0x1]
    %v194 = vperm.slane %v192, 0
    %v196 = vadd.f32 %v189, %v194
    %v197 = vmax.f32 %v196, 0.0
    %s198 = scalar_lea.vmem [#allocation2], 64
    %v199 = vld [vmem:[%s198] sm:$0xff]
    %v200 = vld [vmem:[%s198 + $0x8] sm:$0xff]
    %v201 = vld [vmem:[%s198 + $0x10] sm:$0xff]
    %v202 = vld [vmem:[%s198 + $0x18] sm:$0xff]
    %v203 = vld [vmem:[%s198 + $0x20] sm:$0xff]
    %v204 = vld [vmem:[%s198 + $0x28] sm:$0xff]
    %v205 = vld [vmem:[%s198 + $0x30] sm:$0xff]
    %v206 = vld [vmem:[%s198 + $0x38] sm:$0xff]
    %v208 = vsel %vm167, %v197, 0
    %210 = vmatpush.msra.mxu0 0.0
    %211 = vmatpush.msra.mxu0 0.0
    %212 = vmatpush.msra.mxu0 0.0
    %213 = vmatpush.msra.mxu0 0.0
    %214 = vmatpush.msra.mxu0 0.0
    %215 = vmatpush.msra.mxu0 0.0
    %216 = vmatpush.msra.mxu0 0.0
    %217 = vmatpush.msra.mxu0 0.0
    %218 = vmatpush.msra.mxu0 %v206
    %219 = vmatpush.msra.mxu0 %v205
    %220 = vmatpush.msra.mxu0 %v204
    %221 = vmatpush.msra.mxu0 %v203
    %222 = vmatpush.msra.mxu0 %v202
    %223 = vmatpush.msra.mxu0 %v201
    %224 = vmatpush.msra.mxu0 %v200
    %225 = vmatpush.msra.mxu0 %v199
    %226 = vmatmul.f32.gmra.mxu0 %v208
    %v227 = vpop.f32.mrf.mxu0
    %v228 = vadd.f32 %v147, %v227
    %229 = vdwg.mxu0
    %s230 = scalar_lea.vmem %s5, 2
    %v231 = vld [vmem:[%s230] sm:$0x1]
    %v233 = vperm.slane %v231, 0
    %v235 = vadd.f32 %v228, %v233
    %v236 = vmax.f32 %v235, 0.0
    %s237 = scalar_lea.vmem [#allocation2], 128
    %v238 = vld [vmem:[%s237] sm:$0xff]
    %v239 = vld [vmem:[%s237 + $0x8] sm:$0xff]
    %v240 = vld [vmem:[%s237 + $0x10] sm:$0xff]
    %v241 = vld [vmem:[%s237 + $0x18] sm:$0xff]
    %v242 = vld [vmem:[%s237 + $0x20] sm:$0xff]
    %v243 = vld [vmem:[%s237 + $0x28] sm:$0xff]
    %v244 = vld [vmem:[%s237 + $0x30] sm:$0xff]
    %v245 = vld [vmem:[%s237 + $0x38] sm:$0xff]
    %247 = vrot.lane.b32.xlu0 %v147, 64
    %v248 = vpop.permute.xlu0 %247
    %v251 = vsel %vm167, %v236, 0
    %253 = vmatpush.msra.mxu0 0.0
    %254 = vmatpush.msra.mxu0 0.0
    %255 = vmatpush.msra.mxu0 0.0
    %256 = vmatpush.msra.mxu0 0.0
    %257 = vmatpush.msra.mxu0 0.0
    %258 = vmatpush.msra.mxu0 0.0
    %259 = vmatpush.msra.mxu0 0.0
    %260 = vmatpush.msra.mxu0 0.0
    %261 = vmatpush.msra.mxu0 %v245
    %262 = vmatpush.msra.mxu0 %v244
    %263 = vmatpush.msra.mxu0 %v243
    %264 = vmatpush.msra.mxu0 %v242
    %265 = vmatpush.msra.mxu0 %v241
    %266 = vmatpush.msra.mxu0 %v240
    %267 = vmatpush.msra.mxu0 %v239
    %268 = vmatpush.msra.mxu0 %v238
    %269 = vmatmul.f32.gmra.mxu0 %v251
    %v270 = vpop.f32.mrf.mxu0
    %v271 = vadd.f32 %v248, %v270
    %272 = vdwg.mxu0
    %s273 = scalar_lea.vmem %s5, 3
    %v274 = vld [vmem:[%s273] sm:$0x1]
    %v276 = vperm.slane %v274, 0
    %v278 = vadd.f32 %v271, %v276
    %v279 = vmax.f32 %v278, 0.0
    %v280 = vld [vmem:[%s6] sm:$0xff]
    %v281 = vld [vmem:[%s6 + $0x8] sm:$0xff]
    %v282 = vld [vmem:[%s6 + $0x10] sm:$0xff]
    %v283 = vld [vmem:[%s6 + $0x18] sm:$0xff]
    %v284 = vld [vmem:[%s6 + $0x20] sm:$0xff]
    %v285 = vld [vmem:[%s6 + $0x28] sm:$0xff]
    %v286 = vld [vmem:[%s6 + $0x30] sm:$0xff]
    %v287 = vld [vmem:[%s6 + $0x38] sm:$0xff]
    %v288 = vld [vmem:[%s7] sm:$0x1]
    %v290 = vperm.slane %v288, 0
    %v293 = vsel %vm167, %v279, 0
    %295 = vmatpush.msra.mxu0 0.0
    %296 = vmatpush.msra.mxu0 0.0
    %297 = vmatpush.msra.mxu0 0.0
    %298 = vmatpush.msra.mxu0 0.0
    %299 = vmatpush.msra.mxu0 0.0
    %300 = vmatpush.msra.mxu0 0.0
    %301 = vmatpush.msra.mxu0 0.0
    %302 = vmatpush.msra.mxu0 0.0
    %303 = vmatpush.msra.mxu0 %v287
    %304 = vmatpush.msra.mxu0 %v286
    %305 = vmatpush.msra.mxu0 %v285
    %306 = vmatpush.msra.mxu0 %v284
    %307 = vmatpush.msra.mxu0 %v283
    %308 = vmatpush.msra.mxu0 %v282
    %309 = vmatpush.msra.mxu0 %v281
    %310 = vmatpush.msra.mxu0 %v280
    %311 = vmatmul.f32.gmra.mxu0 %v293
    %v312 = vpop.f32.mrf.mxu0
    %v313 = vadd.f32 %v290, %v312
    %314 = vdwg.mxu0
    %vm315 = vcmask 15360
    %316 = vst.msk [vmem:[%s8] sm:$0xff] %vm315, %v313
    // Predicated region
    $region38: #{tpu_custom_call.1} parent=1 // pred_check
      _
    $region39: #{tpu_custom_call.1} parent=1 // pred_check_branch
      %318 = sbr.rel (0) target = $region41
    $region40: #{tpu_custom_call.1} parent=1 // pred_region
      _
    $region41: #{tpu_custom_call.1} parent=1 // pred_fallthru
      _
    // Predicated region
    $region42: #{tpu_custom_call.1} parent=1 // pred_check
      _
    $region43: #{tpu_custom_call.1} parent=1 // pred_check_branch
      %320 = sbr.rel (0) target = $region45
    $region44: #{tpu_custom_call.1} parent=1 // pred_region
      _
    $region45: #{tpu_custom_call.1} parent=1 // pred_fallthru
      _
    %321 = vsyncpa [#allocation3], 1

</llo_original>
